<compile_context>
chip_gen: v6e
topology: v6e:2x2x1
jax: 0.10.0
libtpu: 0.0.40
codegen_flags: <defaults>
</compile_context>

<pallas_src>
import jax
import jax.numpy as jnp
from jax.experimental import pallas as pl
from jax.experimental.pallas import tpu as pltpu

LANE = 128          # vreg lane width (last dim)
SUBLANE = 8         # vreg sublane width (second-to-last dim)

# Tile-planning budget, sized for v7x (64 MiB physical VMEM) with headroom;
# also well under v5e/v6e's 128 MiB.
_VMEM_TILE_BUDGET = 40 * 1024 * 1024
_VMEM_LIMIT_BYTES = 48 * 1024 * 1024


def _round_up(x, m):
    return ((x + m - 1) // m) * m


def _mlp_kernel(x_ref, w1_ref, b1_ref, w2_ref, b2_ref, o_ref):
    # linear1: x @ W1 + b1, then clamp(min=0) == ReLU (f32 accumulate on MXU).
    h = jnp.dot(x_ref[...], w1_ref[...], preferred_element_type=jnp.float32)
    h = jnp.maximum(h + b1_ref[...], 0.0)            # (tN, Hp) + (1, Hp)
    # linear2: h_relu @ W2 + b2 (f32 accumulate; feeds MXU in the weight dtype).
    y = jnp.dot(h.astype(w2_ref.dtype), w2_ref[...],
                preferred_element_type=jnp.float32)
    o_ref[...] = (y + b2_ref[...]).astype(o_ref.dtype)   # (tN, Dout_p)


def prepare_params(w1, b1, w2, b2, *, param_dtype=None):
    """One-time parameter preparation (call once at init/load, NOT per forward).

    Takes torch nn.Linear layouts:
      w1: (H, D_in), b1: (H,), w2: (D_out, H), b2: (D_out,)
    Returns a dict with pre-transposed, lane-padded parameters:
      w1_t: (D_in_p, H_p), b1: (1, H_p), w2_t: (H_p, D_out_p), b2: (1, D_out_p)
    """
    w1 = jnp.asarray(w1)
    b1 = jnp.asarray(b1)
    w2 = jnp.asarray(w2)
    b2 = jnp.asarray(b2)
    if param_dtype is not None:
        w1, b1, w2, b2 = (t.astype(param_dtype) for t in (w1, b1, w2, b2))

    H, D_in = w1.shape
    D_out = w2.shape[0]
    D_in_p = _round_up(D_in, LANE)
    H_p = _round_up(H, LANE)
    D_out_p = _round_up(D_out, LANE)

    w1_t = jnp.zeros((D_in_p, H_p), w1.dtype).at[:D_in, :H].set(w1.T)
    b1_r = jnp.zeros((1, H_p), b1.dtype).at[0, :H].set(b1)
    w2_t = jnp.zeros((H_p, D_out_p), w2.dtype).at[:H, :D_out].set(w2.T)
    b2_r = jnp.zeros((1, D_out_p), b2.dtype).at[0, :D_out].set(b2)

    return dict(w1_t=w1_t, b1=b1_r, w2_t=w2_t, b2=b2_r,
                D_in=D_in, H=H, D_out=D_out,
                D_in_p=D_in_p, H_p=H_p, D_out_p=D_out_p)


def _pick_batch_tile(n, d_in_p, h_p, d_out_p, io_bytes):
    """Largest batch tile whose VMEM footprint fits the (v7x-safe) budget."""
    tn = max(_round_up(min(n, 1024), SUBLANE), SUBLANE)
    while tn > SUBLANE:
        est = (
            2 * tn * (d_in_p + d_out_p) * io_bytes                 # dbl-buffered x / out
            + 2 * (d_in_p * h_p + h_p * d_out_p + h_p + d_out_p) * io_bytes  # resident params
            + tn * h_p * 4 + tn * d_out_p * 4                      # f32 intermediates
        )
        if est <= _VMEM_TILE_BUDGET:
            break
        tn = max(_round_up(tn // 2, SUBLANE), SUBLANE)
    return tn


def two_layer_net(x, params):
    """Forward pass of TwoLayerNet. x: (N, D_in) -> (N, D_out)."""
    N, D_in = x.shape
    assert D_in == params["D_in"]
    D_out = params["D_out"]
    D_in_p, H_p, D_out_p = params["D_in_p"], params["H_p"], params["D_out_p"]

    io_bytes = jnp.dtype(x.dtype).itemsize
    tn = _pick_batch_tile(N, D_in_p, H_p, D_out_p, io_bytes)
    N_p = _round_up(N, tn)
    grid = (N_p // tn,)

    # Pad the activation to the lane-aligned feature width / batch-tile multiple.
    x_p = x
    if N_p != N or D_in_p != D_in:
        x_p = jnp.zeros((N_p, D_in_p), x.dtype).at[:N, :D_in].set(x)

    out_p = pl.pallas_call(
        _mlp_kernel,
        out_shape=jax.ShapeDtypeStruct((N_p, D_out_p), x.dtype),
        grid=grid,
        in_specs=[
            pl.BlockSpec((tn, D_in_p), lambda i: (i, 0)),      # streamed x tiles
            pl.BlockSpec((D_in_p, H_p), lambda i: (0, 0)),     # resident W1
            pl.BlockSpec((1, H_p), lambda i: (0, 0)),          # resident b1
            pl.BlockSpec((H_p, D_out_p), lambda i: (0, 0)),    # resident W2
            pl.BlockSpec((1, D_out_p), lambda i: (0, 0)),      # resident b2
        ],
        out_specs=pl.BlockSpec((tn, D_out_p), lambda i: (i, 0)),
        compiler_params=pltpu.CompilerParams(
            dimension_semantics=("parallel",),     # batch axis -> both TCs on v7x
            vmem_limit_bytes=_VMEM_LIMIT_BYTES,
        ),
    )(x_p, params["w1_t"], params["b1"], params["w2_t"], params["b2"])

    return out_p[:N, :D_out]


def init_params(key, D_in, H, D_out, dtype=jnp.float32):
    """Deterministic init mimicking torch nn.Linear (uniform +/- 1/sqrt(fan_in))."""
    k1, k2, k3, k4 = jax.random.split(key, 4)
    lim1 = 1.0 / jnp.sqrt(D_in)
    lim2 = 1.0 / jnp.sqrt(H)
    w1 = jax.random.uniform(k1, (H, D_in), dtype, -lim1, lim1)
    b1 = jax.random.uniform(k2, (H,), dtype, -lim1, lim1)
    w2 = jax.random.uniform(k3, (D_out, H), dtype, -lim2, lim2)
    b2 = jax.random.uniform(k4, (D_out,), dtype, -lim2, lim2)
    return w1, b1, w2, b2


if __name__ == "__main__":
    # Small test shapes consistent with TwoLayerNet(D_in=64, H=32, D_out=16).
    N, D_in, H, D_out = 64, 64, 32, 16

    key = jax.random.PRNGKey(0)
    kx, kp = jax.random.split(key)
    x = jax.random.normal(kx, (N, D_in), jnp.float32)
    w1, b1, w2, b2 = init_params(kp, D_in, H, D_out)

    # One-time param prep (transpose + pad). Use param_dtype=jnp.bfloat16 for
    # half-bandwidth weights on v6e/v7x; f32 here to keep the strict check.
    params = prepare_params(w1, b1, w2, b2, param_dtype=jnp.float32)

    y = jax.block_until_ready(two_layer_net(x, params))

    # Reference check in plain JAX (same math as the torch forward).
    h_ref = jnp.maximum(x @ w1.T + b1, 0.0)
    y_ref = h_ref @ w2.T + b2
    assert y.shape == (N, D_out)
    assert jnp.allclose(y, y_ref, atol=1e-5, rtol=1e-5)

    print("KERNEL_OK")
</pallas_src>

<mosaic_0001>
module attributes {stable_mosaic.version = 11 : i64} {
  func.func @_mlp_kernel(%arg0: i32, %arg1: memref<64x128xf32, #tpu.memory_space<vmem>>, %arg2: memref<128x128xf32, #tpu.memory_space<vmem>>, %arg3: memref<1x128xf32, #tpu.memory_space<vmem>>, %arg4: memref<128x128xf32, #tpu.memory_space<vmem>>, %arg5: memref<1x128xf32, #tpu.memory_space<vmem>>, %arg6: memref<64x128xf32, #tpu.memory_space<vmem>>) attributes {dimension_semantics = [#tpu.dimension_semantics<parallel>], iteration_bounds = array<i64: 1>, scalar_prefetch = 0 : i64, scratch_operands = 0 : i64, tpu.core_type = #tpu.core_type<tc>, window_params = [{transform_indices = @transform_0, window_bounds = array<i64: 64, 128>}, {pipeline_mode = #tpu.pipeline_mode<synchronous>, transform_indices = @transform_1, window_bounds = array<i64: 128, 128>}, {pipeline_mode = #tpu.pipeline_mode<synchronous>, transform_indices = @transform_2, window_bounds = array<i64: 1, 128>}, {pipeline_mode = #tpu.pipeline_mode<synchronous>, transform_indices = @transform_3, window_bounds = array<i64: 128, 128>}, {pipeline_mode = #tpu.pipeline_mode<synchronous>, transform_indices = @transform_4, window_bounds = array<i64: 1, 128>}, {transform_indices = @transform_5, window_bounds = array<i64: 64, 128>}]} {
    %c0 = arith.constant 0 : index
    %c0_0 = arith.constant 0 : index
    %0 = vector.load %arg1[%c0, %c0_0] : memref<64x128xf32, #tpu.memory_space<vmem>>, vector<64x128xf32>
    %c0_1 = arith.constant 0 : index
    %c0_2 = arith.constant 0 : index
    %1 = vector.load %arg2[%c0_1, %c0_2] : memref<128x128xf32, #tpu.memory_space<vmem>>, vector<128x128xf32>
    %cst = arith.constant dense<0.000000e+00> : vector<64x128xf32>
    %2 = tpu.matmul %0, %1, %cst {dimension_numbers = #tpu.dot_dimension_numbers<[1], [0], [0], [1], [0, 0, 1, 1], [], []>} : vector<64x128xf32>, vector<128x128xf32>, vector<64x128xf32> -> vector<64x128xf32>
    %c0_3 = arith.constant 0 : index
    %c0_4 = arith.constant 0 : index
    %3 = vector.load %arg3[%c0_3, %c0_4] : memref<1x128xf32, #tpu.memory_space<vmem>>, vector<1x128xf32>
    %4 = vector.broadcast %3 : vector<1x128xf32> to vector<64x128xf32>
    %5 = arith.addf %2, %4 : vector<64x128xf32>
    %cst_5 = arith.constant 0.000000e+00 : f32
    %6 = vector.broadcast %cst_5 : f32 to vector<64x128xf32>
    %7 = arith.maximumf %5, %6 : vector<64x128xf32>
    %c0_6 = arith.constant 0 : index
    %c0_7 = arith.constant 0 : index
    %8 = vector.load %arg4[%c0_6, %c0_7] : memref<128x128xf32, #tpu.memory_space<vmem>>, vector<128x128xf32>
    %cst_8 = arith.constant dense<0.000000e+00> : vector<64x128xf32>
    %9 = tpu.matmul %7, %8, %cst_8 {dimension_numbers = #tpu.dot_dimension_numbers<[1], [0], [0], [1], [0, 0, 1, 1], [], []>} : vector<64x128xf32>, vector<128x128xf32>, vector<64x128xf32> -> vector<64x128xf32>
    %c0_9 = arith.constant 0 : index
    %c0_10 = arith.constant 0 : index
    %10 = vector.load %arg5[%c0_9, %c0_10] : memref<1x128xf32, #tpu.memory_space<vmem>>, vector<1x128xf32>
    %11 = vector.broadcast %10 : vector<1x128xf32> to vector<64x128xf32>
    %12 = arith.addf %9, %11 : vector<64x128xf32>
    %c0_11 = arith.constant 0 : index
    %c0_12 = arith.constant 0 : index
    %13 = vector.load %arg6[%c0_11, %c0_12] : memref<64x128xf32, #tpu.memory_space<vmem>>, vector<64x128xf32>
    tpu.vector_store %arg6[%c0_11, %c0_12], %12 {strides = array<i32>} : memref<64x128xf32, #tpu.memory_space<vmem>>, vector<64x128xf32>,
    return
  }
  func.func @transform_0(%arg0: i32) -> (i32, i32) {
    %c0_i32 = arith.constant 0 : i32
    %c0_i32_0 = arith.constant 0 : i32
    return %arg0, %c0_i32 : i32, i32
  }
  func.func @transform_1(%arg0: i32) -> (i32, i32) {
    %c0_i32 = arith.constant 0 : i32
    %c0_i32_0 = arith.constant 0 : i32
    %c0_i32_1 = arith.constant 0 : i32
    return %c0_i32, %c0_i32_0 : i32, i32
  }
  func.func @transform_2(%arg0: i32) -> (i32, i32) {
    %c0_i32 = arith.constant 0 : i32
    %c0_i32_0 = arith.constant 0 : i32
    %c0_i32_1 = arith.constant 0 : i32
    return %c0_i32, %c0_i32_0 : i32, i32
  }
  func.func @transform_3(%arg0: i32) -> (i32, i32) {
    %c0_i32 = arith.constant 0 : i32
    %c0_i32_0 = arith.constant 0 : i32
    %c0_i32_1 = arith.constant 0 : i32
    return %c0_i32, %c0_i32_0 : i32, i32
  }
  func.func @transform_4(%arg0: i32) -> (i32, i32) {
    %c0_i32 = arith.constant 0 : i32
    %c0_i32_0 = arith.constant 0 : i32
    %c0_i32_1 = arith.constant 0 : i32
    return %c0_i32, %c0_i32_0 : i32, i32
  }
  func.func @transform_5(%arg0: i32) -> (i32, i32) {
    %c0_i32 = arith.constant 0 : i32
    %c0_i32_0 = arith.constant 0 : i32
    return %arg0, %c0_i32 : i32, i32
  }
}

</mosaic_0001>

<llo_original>
// kernel: tpu_custom_call.1
$region0: #{tpu_custom_call.1}
  #allocation0 [shape = 'u32[]', space=smem, size = 0x4, offset = 0x4, fixed_abs, tag = 'smem constant byte address 0x4 - core index']
  #allocation1 [shape = 'u32[144,128]{1,0:T(1,128)}', space=vmem, size = 0x12000, scoped, tag = 'internal scratch']
  %s0 = inlined_call_operand.hbm [shape: f32[64,128], index: 0, kind: input, shape index: {}]
  %s1 = inlined_call_operand.hbm [shape: f32[128,128], index: 1, kind: input, shape index: {}]
  %s2 = inlined_call_operand.vmem [shape: f32[1,128], index: 2, kind: input, shape index: {}]
  %s3 = inlined_call_operand.hbm [shape: f32[128,128], index: 3, kind: input, shape index: {}]
  %s4 = inlined_call_operand.vmem [shape: f32[1,128], index: 4, kind: input, shape index: {}]
  %s5 = inlined_call_operand.hbm [shape: f32[64,128], index: 5, kind: output, shape index: {}]
  %s6 = sld [smem:[#allocation0]]
  $region42: #{tpu_custom_call.1} parent=0
    _
  %s8 = ssub.s32 1, %s6
  %s9 = scalar_select 0, %s8, %s6
  $region1: #{tpu_custom_call.1} parent=0
    #allocation2 [shape = 'u8[32768]{0}', space=vmem, size = 0x8000, scoped, tag = 'input window, operand 0, single buffered']
    #allocation3 [shape = 's32[1]{0}', space=sflag, size = 0x4, scoped, tag = 'scoped memory for tpu_custom_call.1']
    #allocation4 [shape = 's32[1]{0}', space=sflag, size = 0x4, scoped, tag = 'scoped memory for tpu_custom_call.1']
    #allocation5 [shape = 'u8[65536]{0}', space=vmem, size = 0x10000, scoped, tag = 'input window, operand 1, single buffered']
    #allocation6 [shape = 's32[1]{0}', space=sflag, size = 0x4, scoped, tag = 'scoped memory for tpu_custom_call.1']
    #allocation7 [shape = 'u8[65536]{0}', space=vmem, size = 0x10000, scoped, tag = 'input window, operand 3, single buffered']
    #allocation8 [shape = 'u8[32768]{0}', space=vmem, size = 0x8000, scoped, tag = 'output window, operand 0, single buffered']
    %10 = vsyncpa [#allocation3], 0
    %11 = vsyncpa [#allocation6], 0
    %12 = vsyncpa [#allocation4], 0
    // Predicated region
    $region2: #{tpu_custom_call.1} parent=1 // pred_check
      _
    $region3: #{tpu_custom_call.1} parent=1 // pred_check_branch
      %14 = sbr.rel (0) target = $region5
    $region4: #{tpu_custom_call.1} parent=1 // pred_region
      %s16 = ssub.s32 1024, 1024
      %17 = vsyncadd [#allocation3], %s16
      %s18 = sshll.u32 [#allocation2], 4
      %s19 = int_to_ptr.vmem [resolvable:$true] %s18
      %24 = dma.hbm_to_vmem [thread:$0]  %s0, 1024, %s19, [#allocation3], 128, 128, 8
    $region5: #{tpu_custom_call.1} parent=1 // pred_fallthru
      _
    // Predicated region
    $region6: #{tpu_custom_call.1} parent=1 // pred_check
      _
    $region7: #{tpu_custom_call.1} parent=1 // pred_check_branch
      %26 = sbr.rel (0) target = $region9
    $region8: #{tpu_custom_call.1} parent=1 // pred_region
      %s28 = ssub.s32 2048, 2048
      %29 = vsyncadd [#allocation6], %s28
      %s30 = sshll.u32 [#allocation5], 4
      %s31 = int_to_ptr.vmem [resolvable:$true] %s30
      %36 = dma.hbm_to_vmem [thread:$0]  %s1, 2048, %s31, [#allocation6], 128, 128, 8
    $region9: #{tpu_custom_call.1} parent=1 // pred_fallthru
      _
    // Predicated region
    $region10: #{tpu_custom_call.1} parent=1 // pred_check
      _
    $region11: #{tpu_custom_call.1} parent=1 // pred_check_branch
      %38 = sbr.rel (0) target = $region13
    $region12: #{tpu_custom_call.1} parent=1 // pred_region
      _
    $region13: #{tpu_custom_call.1} parent=1 // pred_fallthru
      _
    // Predicated region
    $region14: #{tpu_custom_call.1} parent=1 // pred_check
      _
    $region15: #{tpu_custom_call.1} parent=1 // pred_check_branch
      %40 = sbr.rel (0) target = $region17
    $region16: #{tpu_custom_call.1} parent=1 // pred_region
      %s42 = ssub.s32 2048, 2048
      %43 = vsyncadd [#allocation6], %s42
      %s44 = sshll.u32 [#allocation7], 4
      %s45 = int_to_ptr.vmem [resolvable:$true] %s44
      %50 = dma.hbm_to_vmem [thread:$0]  %s3, 2048, %s45, [#allocation6], 128, 128, 8
    $region17: #{tpu_custom_call.1} parent=1 // pred_fallthru
      _
    // Predicated region
    $region18: #{tpu_custom_call.1} parent=1 // pred_check
      _
    $region19: #{tpu_custom_call.1} parent=1 // pred_check_branch
      %52 = sbr.rel (0) target = $region21
    $region20: #{tpu_custom_call.1} parent=1 // pred_region
      _
    $region21: #{tpu_custom_call.1} parent=1 // pred_fallthru
      _
    // Predicated region
    $region22: #{tpu_custom_call.1} parent=1 // pred_check
      _
    $region23: #{tpu_custom_call.1} parent=1 // pred_check_branch
      %54 = sbr.rel (0) target = $region25
    $region24: #{tpu_custom_call.1} parent=1 // pred_region
      %55 = dma.done [#allocation3], 1024
    $region25: #{tpu_custom_call.1} parent=1 // pred_fallthru
      _
    // Predicated region
    $region26: #{tpu_custom_call.1} parent=1 // pred_check
      _
    $region27: #{tpu_custom_call.1} parent=1 // pred_check_branch
      %57 = sbr.rel (0) target = $region29
    $region28: #{tpu_custom_call.1} parent=1 // pred_region
      %58 = dma.done [#allocation6], 2048
    $region29: #{tpu_custom_call.1} parent=1 // pred_fallthru
      _
    // Predicated region
    $region30: #{tpu_custom_call.1} parent=1 // pred_check
      _
    $region31: #{tpu_custom_call.1} parent=1 // pred_check_branch
      %60 = sbr.rel (0) target = $region33
    $region32: #{tpu_custom_call.1} parent=1 // pred_region
      %61 = dma.done [#allocation6], 2048
    $region33: #{tpu_custom_call.1} parent=1 // pred_fallthru
      _
    %v62 = vld [vmem:[#allocation2] sm:$0xff]
    %v63 = vld [vmem:[#allocation2 + $0x8] sm:$0xff]
    %v64 = vld [vmem:[#allocation2 + $0x10] sm:$0xff]
    %v65 = vld [vmem:[#allocation2 + $0x18] sm:$0xff]
    %v66 = vld [vmem:[#allocation2 + $0x20] sm:$0xff]
    %v67 = vld [vmem:[#allocation2 + $0x28] sm:$0xff]
    %v68 = vld [vmem:[#allocation2 + $0x30] sm:$0xff]
    %v69 = vld [vmem:[#allocation2 + $0x38] sm:$0xff]
    %v70 = vld [vmem:[#allocation5] sm:$0xff]
    %v71 = vld [vmem:[#allocation5 + $0x8] sm:$0xff]
    %v72 = vld [vmem:[#allocation5 + $0x10] sm:$0xff]
    %v73 = vld [vmem:[#allocation5 + $0x18] sm:$0xff]
    %v74 = vld [vmem:[#allocation5 + $0x20] sm:$0xff]
    %v75 = vld [vmem:[#allocation5 + $0x28] sm:$0xff]
    %v76 = vld [vmem:[#allocation5 + $0x30] sm:$0xff]
    %v77 = vld [vmem:[#allocation5 + $0x38] sm:$0xff]
    %v78 = vld [vmem:[#allocation5 + $0x40] sm:$0xff]
    %v79 = vld [vmem:[#allocation5 + $0x48] sm:$0xff]
    %v80 = vld [vmem:[#allocation5 + $0x50] sm:$0xff]
    %v81 = vld [vmem:[#allocation5 + $0x58] sm:$0xff]
    %v82 = vld [vmem:[#allocation5 + $0x60] sm:$0xff]
    %v83 = vld [vmem:[#allocation5 + $0x68] sm:$0xff]
    %v84 = vld [vmem:[#allocation5 + $0x70] sm:$0xff]
    %v85 = vld [vmem:[#allocation5 + $0x78] sm:$0xff]
    %v86 = vld [vmem:[%s2] sm:$0x1]
    %v88 = vlaneseq
    %v89 = vshrl.u32 %v88, 7
    %v90 = vsub.s32 0, %v89
    %v91 = vrot.slane %v86, %v90
    %93 = vmatprep.subr.mxu0 0.0
    %94 = vmatpush1.msra.mxu0 %v85
    %95 = vmatprep.subr.mxu0 0.0
    %96 = vmatpush1.msra.mxu0 %v84
    %97 = vmatprep.subr.mxu0 0.0
    %98 = vmatpush1.msra.mxu0 %v83
    %99 = vmatprep.subr.mxu0 0.0
    %100 = vmatpush1.msra.mxu0 %v82
    %101 = vmatprep.subr.mxu0 0.0
    %102 = vmatpush1.msra.mxu0 %v81
    %103 = vmatprep.subr.mxu0 0.0
    %104 = vmatpush1.msra.mxu0 %v80
    %105 = vmatprep.subr.mxu0 0.0
    %106 = vmatpush1.msra.mxu0 %v79
    %107 = vmatprep.subr.mxu0 0.0
    %108 = vmatpush1.msra.mxu0 %v78
    %109 = vmatprep.subr.mxu0 0.0
    %110 = vmatpush1.msra.mxu0 %v77
    %111 = vmatprep.subr.mxu0 0.0
    %112 = vmatpush1.msra.mxu0 %v76
    %113 = vmatprep.subr.mxu0 0.0
    %114 = vmatpush1.msra.mxu0 %v75
    %115 = vmatprep.subr.mxu0 0.0
    %116 = vmatpush1.msra.mxu0 %v74
    %117 = vmatprep.subr.mxu0 0.0
    %118 = vmatpush1.msra.mxu0 %v73
    %119 = vmatprep.subr.mxu0 0.0
    %120 = vmatpush1.msra.mxu0 %v72
    %121 = vmatprep.subr.mxu0 0.0
    %122 = vmatpush1.msra.mxu0 %v71
    %123 = vmatprep.subr.mxu0 0.0
    %124 = vmatpush1.msra.mxu0 %v70
    %125 = vmatprep.subr.mxu0 0.0
    %126 = vmatpush2.msra.mxu0 0.0
    %127 = vmatprep.subr.mxu0 0.0
    %128 = vmatpush2.msra.mxu0 0.0
    %129 = vmatprep.subr.mxu0 0.0
    %130 = vmatpush2.msra.mxu0 0.0
    %131 = vmatprep.subr.mxu0 0.0
    %132 = vmatpush2.msra.mxu0 0.0
    %133 = vmatprep.subr.mxu0 0.0
    %134 = vmatpush2.msra.mxu0 0.0
    %135 = vmatprep.subr.mxu0 0.0
    %136 = vmatpush2.msra.mxu0 0.0
    %137 = vmatprep.subr.mxu0 0.0
    %138 = vmatpush2.msra.mxu0 0.0
    %139 = vmatprep.subr.mxu0 0.0
    %140 = vmatpush2.msra.mxu0 0.0
    %141 = vmatprep.subr.mxu0 0.0
    %142 = vmatpush2.msra.mxu0 0.0
    %143 = vmatprep.subr.mxu0 0.0
    %144 = vmatpush2.msra.mxu0 0.0
    %145 = vmatprep.subr.mxu0 0.0
    %146 = vmatpush2.msra.mxu0 0.0
    %147 = vmatprep.subr.mxu0 0.0
    %148 = vmatpush2.msra.mxu0 0.0
    %149 = vmatprep.subr.mxu0 0.0
    %150 = vmatpush2.msra.mxu0 0.0
    %151 = vmatprep.subr.mxu0 0.0
    %152 = vmatpush2.msra.mxu0 0.0
    %153 = vmatprep.subr.mxu0 0.0
    %154 = vmatpush2.msra.mxu0 0.0
    %155 = vmatprep.subr.mxu0 0.0
    %156 = vmatpush2.msra.mxu0 0.0
    %157 = vmatprep.mubr.f32.mxu0 0.0
    %158 = vmatmul.mubr.f32.gmra.mxu0 %v62
    %v159 = vpop.f32.mrf.mxu0
    %v160 = vadd.f32 %v91, %v159
    %v161 = vpop.f32.mrf.mxu0
    %162 = vmatprep.mubr.f32.mxu0 0.0
    %163 = vmatmul.mubr.f32.gmra.mxu0 %v63
    %v164 = vpop.f32.mrf.mxu0
    %v165 = vadd.f32 %v91, %v164
    %v166 = vpop.f32.mrf.mxu0
    %167 = vmatprep.mubr.f32.mxu0 0.0
    %168 = vmatmul.mubr.f32.gmra.mxu0 %v64
    %v169 = vpop.f32.mrf.mxu0
    %v170 = vadd.f32 %v91, %v169
    %v171 = vpop.f32.mrf.mxu0
    %172 = vmatprep.mubr.f32.mxu0 0.0
    %173 = vmatmul.mubr.f32.gmra.mxu0 %v65
    %v174 = vpop.f32.mrf.mxu0
    %v175 = vadd.f32 %v91, %v174
    %v176 = vpop.f32.mrf.mxu0
    %177 = vmatprep.mubr.f32.mxu0 0.0
    %178 = vmatmul.mubr.f32.gmra.mxu0 %v66
    %v179 = vpop.f32.mrf.mxu0
    %v180 = vadd.f32 %v91, %v179
    %v181 = vpop.f32.mrf.mxu0
    %182 = vmatprep.mubr.f32.mxu0 0.0
    %183 = vmatmul.mubr.f32.gmra.mxu0 %v67
    %v184 = vpop.f32.mrf.mxu0
    %v185 = vadd.f32 %v91, %v184
    %v186 = vpop.f32.mrf.mxu0
    %187 = vmatprep.mubr.f32.mxu0 0.0
    %188 = vmatmul.mubr.f32.gmra.mxu0 %v68
    %v189 = vpop.f32.mrf.mxu0
    %v190 = vadd.f32 %v91, %v189
    %v191 = vpop.f32.mrf.mxu0
    %192 = vmatprep.mubr.f32.mxu0 0.0
    %193 = vmatmul.mubr.f32.gmra.mxu0 %v69
    %v194 = vpop.f32.mrf.mxu0
    %v195 = vadd.f32 %v91, %v194
    %v196 = vpop.f32.mrf.mxu0
    %197 = vdwg.mxu0
    %v198 = vmax.f32 %v160, 0.0
    %v199 = vmax.f32 %v165, 0.0
    %v200 = vmax.f32 %v170, 0.0
    %v201 = vmax.f32 %v175, 0.0
    %v202 = vmax.f32 %v180, 0.0
    %v203 = vmax.f32 %v185, 0.0
    %v204 = vmax.f32 %v190, 0.0
    %v205 = vmax.f32 %v195, 0.0
    %v206 = vld [vmem:[#allocation7] sm:$0xff]
    %v207 = vld [vmem:[#allocation7 + $0x8] sm:$0xff]
    %v208 = vld [vmem:[#allocation7 + $0x10] sm:$0xff]
    %v209 = vld [vmem:[#allocation7 + $0x18] sm:$0xff]
    %v210 = vld [vmem:[#allocation7 + $0x20] sm:$0xff]
    %v211 = vld [vmem:[#allocation7 + $0x28] sm:$0xff]
    %v212 = vld [vmem:[#allocation7 + $0x30] sm:$0xff]
    %v213 = vld [vmem:[#allocation7 + $0x38] sm:$0xff]
    %v214 = vld [vmem:[#allocation7 + $0x40] sm:$0xff]
    %v215 = vld [vmem:[#allocation7 + $0x48] sm:$0xff]
    %v216 = vld [vmem:[#allocation7 + $0x50] sm:$0xff]
    %v217 = vld [vmem:[#allocation7 + $0x58] sm:$0xff]
    %v218 = vld [vmem:[#allocation7 + $0x60] sm:$0xff]
    %v219 = vld [vmem:[#allocation7 + $0x68] sm:$0xff]
    %v220 = vld [vmem:[#allocation7 + $0x70] sm:$0xff]
    %v221 = vld [vmem:[#allocation7 + $0x78] sm:$0xff]
    %v222 = vld [vmem:[%s4] sm:$0x1]
    %v224 = vlaneseq
    %v225 = vshrl.u32 %v224, 7
    %v226 = vsub.s32 0, %v225
    %v227 = vrot.slane %v222, %v226
    %229 = vmatprep.subr.mxu0 0.0
    %230 = vmatpush1.msra.mxu0 %v221
    %231 = vmatprep.subr.mxu0 0.0
    %232 = vmatpush1.msra.mxu0 %v220
    %233 = vmatprep.subr.mxu0 0.0
    %234 = vmatpush1.msra.mxu0 %v219
    %235 = vmatprep.subr.mxu0 0.0
    %236 = vmatpush1.msra.mxu0 %v218
    %237 = vmatprep.subr.mxu0 0.0
    %238 = vmatpush1.msra.mxu0 %v217
    %239 = vmatprep.subr.mxu0 0.0
    %240 = vmatpush1.msra.mxu0 %v216
    %241 = vmatprep.subr.mxu0 0.0
    %242 = vmatpush1.msra.mxu0 %v215
    %243 = vmatprep.subr.mxu0 0.0
    %244 = vmatpush1.msra.mxu0 %v214
    %245 = vmatprep.subr.mxu0 0.0
    %246 = vmatpush1.msra.mxu0 %v213
    %247 = vmatprep.subr.mxu0 0.0
    %248 = vmatpush1.msra.mxu0 %v212
    %249 = vmatprep.subr.mxu0 0.0
    %250 = vmatpush1.msra.mxu0 %v211
    %251 = vmatprep.subr.mxu0 0.0
    %252 = vmatpush1.msra.mxu0 %v210
    %253 = vmatprep.subr.mxu0 0.0
    %254 = vmatpush1.msra.mxu0 %v209
    %255 = vmatprep.subr.mxu0 0.0
    %256 = vmatpush1.msra.mxu0 %v208
    %257 = vmatprep.subr.mxu0 0.0
    %258 = vmatpush1.msra.mxu0 %v207
    %259 = vmatprep.subr.mxu0 0.0
    %260 = vmatpush1.msra.mxu0 %v206
    %261 = vmatprep.subr.mxu0 0.0
    %262 = vmatpush2.msra.mxu0 0.0
    %263 = vmatprep.subr.mxu0 0.0
    %264 = vmatpush2.msra.mxu0 0.0
    %265 = vmatprep.subr.mxu0 0.0
    %266 = vmatpush2.msra.mxu0 0.0
    %267 = vmatprep.subr.mxu0 0.0
    %268 = vmatpush2.msra.mxu0 0.0
    %269 = vmatprep.subr.mxu0 0.0
    %270 = vmatpush2.msra.mxu0 0.0
    %271 = vmatprep.subr.mxu0 0.0
    %272 = vmatpush2.msra.mxu0 0.0
    %273 = vmatprep.subr.mxu0 0.0
    %274 = vmatpush2.msra.mxu0 0.0
    %275 = vmatprep.subr.mxu0 0.0
    %276 = vmatpush2.msra.mxu0 0.0
    %277 = vmatprep.subr.mxu0 0.0
    %278 = vmatpush2.msra.mxu0 0.0
    %279 = vmatprep.subr.mxu0 0.0
    %280 = vmatpush2.msra.mxu0 0.0
    %281 = vmatprep.subr.mxu0 0.0
    %282 = vmatpush2.msra.mxu0 0.0
    %283 = vmatprep.subr.mxu0 0.0
    %284 = vmatpush2.msra.mxu0 0.0
    %285 = vmatprep.subr.mxu0 0.0
    %286 = vmatpush2.msra.mxu0 0.0
    %287 = vmatprep.subr.mxu0 0.0
    %288 = vmatpush2.msra.mxu0 0.0
    %289 = vmatprep.subr.mxu0 0.0
    %290 = vmatpush2.msra.mxu0 0.0
    %291 = vmatprep.subr.mxu0 0.0
    %292 = vmatpush2.msra.mxu0 0.0
    %293 = vmatprep.mubr.f32.mxu0 0.0
    %294 = vmatmul.mubr.f32.gmra.mxu0 %v198
    %v295 = vpop.f32.mrf.mxu0
    %v296 = vadd.f32 %v227, %v295
    %v297 = vpop.f32.mrf.mxu0
    %298 = vmatprep.mubr.f32.mxu0 0.0
    %299 = vmatmul.mubr.f32.gmra.mxu0 %v199
    %v300 = vpop.f32.mrf.mxu0
    %v301 = vadd.f32 %v227, %v300
    %v302 = vpop.f32.mrf.mxu0
    %303 = vmatprep.mubr.f32.mxu0 0.0
    %304 = vmatmul.mubr.f32.gmra.mxu0 %v200
    %v305 = vpop.f32.mrf.mxu0
    %v306 = vadd.f32 %v227, %v305
    %v307 = vpop.f32.mrf.mxu0
    %308 = vmatprep.mubr.f32.mxu0 0.0
    %309 = vmatmul.mubr.f32.gmra.mxu0 %v201
    %v310 = vpop.f32.mrf.mxu0
    %v311 = vadd.f32 %v227, %v310
    %v312 = vpop.f32.mrf.mxu0
    %313 = vmatprep.mubr.f32.mxu0 0.0
    %314 = vmatmul.mubr.f32.gmra.mxu0 %v202
    %v315 = vpop.f32.mrf.mxu0
    %v316 = vadd.f32 %v227, %v315
    %v317 = vpop.f32.mrf.mxu0
    %318 = vmatprep.mubr.f32.mxu0 0.0
    %319 = vmatmul.mubr.f32.gmra.mxu0 %v203
    %v320 = vpop.f32.mrf.mxu0
    %v321 = vadd.f32 %v227, %v320
    %v322 = vpop.f32.mrf.mxu0
    %323 = vmatprep.mubr.f32.mxu0 0.0
    %324 = vmatmul.mubr.f32.gmra.mxu0 %v204
    %v325 = vpop.f32.mrf.mxu0
    %v326 = vadd.f32 %v227, %v325
    %v327 = vpop.f32.mrf.mxu0
    %328 = vmatprep.mubr.f32.mxu0 0.0
    %329 = vmatmul.mubr.f32.gmra.mxu0 %v205
    %v330 = vpop.f32.mrf.mxu0
    %v331 = vadd.f32 %v227, %v330
    %v332 = vpop.f32.mrf.mxu0
    %333 = vdwg.mxu0
    %334 = vst [vmem:[#allocation8] sm:$0xff] %v296
    %335 = vst [vmem:[#allocation8 + $0x8] sm:$0xff] %v301
    %336 = vst [vmem:[#allocation8 + $0x10] sm:$0xff] %v306
    %337 = vst [vmem:[#allocation8 + $0x18] sm:$0xff] %v311
    %338 = vst [vmem:[#allocation8 + $0x20] sm:$0xff] %v316
    %339 = vst [vmem:[#allocation8 + $0x28] sm:$0xff] %v321
    %340 = vst [vmem:[#allocation8 + $0x30] sm:$0xff] %v326
    %341 = vst [vmem:[#allocation8 + $0x38] sm:$0xff] %v331
    // Predicated region
    $region34: #{tpu_custom_call.1} parent=1 // pred_check
      _
    $region35: #{tpu_custom_call.1} parent=1 // pred_check_branch
      %343 = sbr.rel (0) target = $region37
    $region36: #{tpu_custom_call.1} parent=1 // pred_region
      %s345 = ssub.s32 1024, 1024
      %346 = vsyncadd [#allocation4], %s345
      %s347 = sshll.u32 [#allocation8], 4
      %s348 = int_to_ptr.vmem [resolvable:$true] %s347
      %353 = dma.vmem_to_hbm [thread:$0]  %s348, 1024, %s5, [#allocation4], 128, 128, 8
    $region37: #{tpu_custom_call.1} parent=1 // pred_fallthru
      _
    // Predicated region
    $region38: #{tpu_custom_call.1} parent=1 // pred_check
      _
    $region39: #{tpu_custom_call.1} parent=1 // pred_check_branch
      %355 = sbr.rel (0) target = $region41
    $region40: #{tpu_custom_call.1} parent=1 // pred_region
      %356 = dma.done [#allocation4], 1024
    $region41: #{tpu_custom_call.1} parent=1 // pred_fallthru
      _
    %357 = vsyncpa [#allocation3], 1
    %358 = vsyncpa [#allocation6], 1
    %359 = vsyncpa [#allocation4], 1

</llo_original>
